<compile_context>
chip_gen: v7x
topology: tpu7x:2x2x1
jax: 0.10.0
libtpu: 0.0.40
codegen_flags: <defaults>
</compile_context>

<pallas_src>
import jax
import jax.numpy as jnp
import numpy as np
from jax.experimental import pallas as pl
from jax.experimental.pallas import tpu as pltpu

P = 128  # lane width / padded square size


def _model_kernel(slab_ref, out_ref, a_sc, b_sc):
    """slab_ref: (2*Rn, 128) zero-padded [x1^T ; x2^T] slabs (At on top).

    out_ref: packed (4*Rn + 16, 128) result slab:
      rows [0Rn,1Rn)        = Bt@At               (v6)
      rows [1Rn,2Rn)        = At@At@Bt            (v8, v10)
      rows [2Rn,3Rn)        = Bt@Bt               (v13)
      rows [3Rn,4Rn)        = (At@Bt)@(Bt@Bt)     (v11)
      rows [4Rn,4Rn+8)      = first 8 rows of At@Bt    (row 0 -> v7, v12)
      rows [4Rn+8,4Rn+16)   = first 8 rows of Bt@At@Bt (row 0 -> v9)
    """
    Rn = slab_ref.shape[0] // 2
    f32 = jnp.float32

    at_slab = slab_ref[0:Rn, :]          # (Rn, 128) top rows of At = x1[0]^T
    bt_slab = slab_ref[Rn:2 * Rn, :]     # (Rn, 128) top rows of Bt = x2[0]^T

    # Only the padding rows need zero-filling; valid rows are written below
    # exactly once.  Zero padding keeps every chained matmul exact.
    if Rn < P:
        pad = jnp.zeros((P - Rn, P), f32)
        a_sc[Rn:P, :] = pad
        b_sc[Rn:P, :] = pad
    a_sc[0:Rn, :] = at_slab              # a_sc = padded At square
    b_sc[0:Rn, :] = bt_slab              # b_sc = padded Bt square

    # NOTE: default matmul precision (review: pass precision=HIGHEST if
    # bit-accuracy vs an f32 reference is ever required for N near 128).
    dot = lambda x, y: jnp.dot(x, y, preferred_element_type=f32)

    bt_sq = b_sc[...]                    # padded Bt (128, 128)
    p_top = dot(at_slab, bt_sq)          # top rows of At @ Bt
    s_top = dot(bt_slab, bt_sq)          # top rows of Bt @ Bt
    q_top = dot(bt_slab, a_sc[...])      # top rows of Bt @ At

    # Reuse a_sc as the padded (At @ Bt) square (padding rows stay zero).
    a_sc[0:Rn, :] = p_top
    p_sq = a_sc[...]
    r_top = dot(at_slab, p_sq)                      # top rows of At @ At @ Bt
    w_top8 = dot(slab_ref[Rn:Rn + 8, :], p_sq)      # rows 0..7 of Bt @ At @ Bt

    # Reuse b_sc as the padded (Bt @ Bt) square.
    b_sc[0:Rn, :] = s_top
    t_top = dot(p_top, b_sc[...])                   # top rows of (At@Bt)@(Bt@Bt)

    out_ref[0 * Rn:1 * Rn, :] = q_top
    out_ref[1 * Rn:2 * Rn, :] = r_top
    out_ref[2 * Rn:3 * Rn, :] = s_top
    out_ref[3 * Rn:4 * Rn, :] = t_top
    out_ref[4 * Rn:4 * Rn + 8, :] = p_top[0:8, :]
    out_ref[4 * Rn + 8:4 * Rn + 16, :] = w_top8


def _run_kernel(slab, Rn):
    out_rows = 4 * Rn + 16
    vmem = pl.BlockSpec(memory_space=pltpu.MemorySpace.VMEM)
    cost = pl.CostEstimate(
        flops=2 * (5 * Rn + 8) * P * P,
        transcendentals=0,
        bytes_accessed=(2 * Rn * P + out_rows * P) * 4,
    )
    return pl.pallas_call(
        _model_kernel,
        out_shape=jax.ShapeDtypeStruct((out_rows, P), jnp.float32),
        in_specs=[vmem],
        out_specs=vmem,
        scratch_shapes=[pltpu.VMEM((P, P), jnp.float32),
                        pltpu.VMEM((P, P), jnp.float32)],
        cost_estimate=cost,
    )(slab)


def _forward_impl(x1, x2):
    """Mirrors Model.forward; every matmul runs inside the Pallas kernel."""
    N = x1.shape[-1]
    if x1.shape != (1, N, N) or x2.shape != (1, N, N):
        raise ValueError(f"expected (1, N, N) inputs, got {x1.shape} / {x2.shape}")
    if N > P:
        raise ValueError(f"N={N} > {P} is not supported by this kernel")
    Rn = ((N + 7) // 8) * 8              # row-slab height (multiple of 8)

    v1 = jnp.transpose(x1, (0, 2, 1)).astype(jnp.float32)   # x1^T (returned)
    bt = jnp.transpose(x2[0], (1, 0)).astype(jnp.float32)   # x2^T (tiny NxN)
    at_pad = jnp.pad(v1[0], ((0, Rn - N), (0, P - N)))
    bt_pad = jnp.pad(bt, ((0, Rn - N), (0, P - N)))
    slab = jnp.concatenate([at_pad, bt_pad], axis=0)         # (2*Rn, 128)

    packed = _run_kernel(slab, Rn)

    q = packed[0 * Rn:0 * Rn + N, :N]    # Bt @ At
    r = packed[1 * Rn:1 * Rn + N, :N]    # At @ At @ Bt
    s = packed[2 * Rn:2 * Rn + N, :N]    # Bt @ Bt
    t = packed[3 * Rn:3 * Rn + N, :N]    # (At@Bt) @ (Bt@Bt)
    p0 = packed[4 * Rn, :N]              # row 0 of At @ Bt
    w0 = packed[4 * Rn + 8, :N]          # row 0 of Bt @ At @ Bt
    v0 = jnp.sum(x2.astype(jnp.float32))                     # sum(x2^T) == sum(x2)

    v6 = q[None, None]                                               # (1,1,N,N)
    v7 = p0.reshape(1, 1, 1, 1, N)                                   # (1,1,1,1,N)
    v8 = r.reshape(1, 1, 1, N, N)                                    # (1,1,1,N,N)
    v9 = w0.reshape(1, 1, 1, N)                                      # (1,1,1,N)
    v10 = r.reshape(1, 1, N, N)                                      # (1,1,N,N)
    v11 = t.reshape(1, 1, 1, N, N)                                   # (1,1,1,N,N)
    v12 = jnp.broadcast_to(p0.reshape(1, 1, 1, N), (1, 2, 2, N))     # (1,2,2,N)
    v13 = s.reshape(1, 1, N, N)                                      # (1,1,N,N)
    return v1, v6, v7, v8, v9, v10, v11, v12, v13, v0


model_forward = jax.jit(_forward_impl)


def _reference(x1, x2):
    """Pure-JAX replica of the torch program (matmul broadcasting semantics)."""
    mm = jnp.matmul
    i0 = jnp.array([0]); im1 = jnp.array([-1]); i00 = jnp.array([0, 0])
    v1 = jnp.transpose(x1, (0, 2, 1))
    v2 = jnp.transpose(x2, (0, 2, 1))
    v3 = v2[None]
    v4 = v1[None]
    v5 = mm(v1[None], v2[None])[0]
    v6 = mm(v3, v4)
    v7 = mm(jnp.expand_dims(v1[:, i0, :], 2), jnp.expand_dims(v3[:, i0, :], 1))
    v8 = mm(jnp.expand_dims(v4[:, im1, :], 2), jnp.expand_dims(v5, 1))
    v9 = mm(jnp.expand_dims(v2[:, i0, :], 2), jnp.expand_dims(v5, 1))
    v10 = mm(v1[None], v5[None])
    v11 = mm(mm(v1[None], v3[None]), mm(v2[None], v3[None]))
    v12 = mm(v1[:, i00, :], v3[:, i00, :])
    v13 = mm(v2, v3)[:, im1, :]
    v0 = jnp.sum(v2 * jnp.ones_like(v5))
    return v1, v6, v7, v8, v9, v10, v11, v12, v13, v0


def _check(x1, x2, rtol, atol):
    outs = jax.block_until_ready(model_forward(x1, x2))
    refs = jax.block_until_ready(_reference(x1, x2))
    for o, rf in zip(outs, refs):
        assert o.shape == rf.shape, (o.shape, rf.shape)
        np.testing.assert_allclose(np.asarray(o), np.asarray(rf), rtol=rtol, atol=atol)


if __name__ == "__main__":
    key = jax.random.PRNGKey(0)
    k1, k2, k3, k4 = jax.random.split(key, 4)

    # Spec shape: (1, 2, 2) inputs, tight tolerance.
    x1 = jax.random.normal(k1, (1, 2, 2), dtype=jnp.float32)
    x2 = jax.random.normal(k2, (1, 2, 2), dtype=jnp.float32)
    _check(x1, x2, rtol=1e-5, atol=1e-5)

    # Larger, non-multiple-of-8 N to exercise the padding / packed-output
    # indexing (loose tolerance: chained products may use reduced-precision
    # MXU passes on both the kernel and the eager-XLA reference side).
    x1b = jax.random.normal(k3, (1, 13, 13), dtype=jnp.float32)
    x2b = jax.random.normal(k4, (1, 13, 13), dtype=jnp.float32)
    _check(x1b, x2b, rtol=5e-2, atol=5e-1)

    print("KERNEL_OK")
</pallas_src>

<mosaic_0001>
module attributes {stable_mosaic.version = 11 : i64} {
  func.func @_model_kernel(%arg0: memref<16x128xf32, #tpu.memory_space<vmem>>, %arg1: memref<48x128xf32, #tpu.memory_space<vmem>>, %arg2: memref<128x128xf32, #tpu.memory_space<vmem>>, %arg3: memref<128x128xf32, #tpu.memory_space<vmem>>) attributes {dimension_semantics = [], scalar_prefetch = 0 : i64, scratch_operands = 2 : i64, tpu.core_type = #tpu.core_type<tc>} {
    %c0 = arith.constant 0 : index
    %c0_0 = arith.constant 0 : index
    %0 = vector.load %arg0[%c0, %c0_0] : memref<16x128xf32, #tpu.memory_space<vmem>>, vector<8x128xf32>
    %c8 = arith.constant 8 : index
    %c0_1 = arith.constant 0 : index
    %1 = vector.load %arg0[%c8, %c0_1] : memref<16x128xf32, #tpu.memory_space<vmem>>, vector<8x128xf32>
    %cst = arith.constant 0.000000e+00 : f32
    %2 = vector.broadcast %cst : f32 to vector<120x128xf32>
    %c8_2 = arith.constant 8 : index
    %c0_3 = arith.constant 0 : index
    %3 = vector.load %arg2[%c8_2, %c0_3] : memref<128x128xf32, #tpu.memory_space<vmem>>, vector<120x128xf32>
    tpu.vector_store %arg2[%c8_2, %c0_3], %2 {strides = array<i32>} : memref<128x128xf32, #tpu.memory_space<vmem>>, vector<120x128xf32>,
    %c8_4 = arith.constant 8 : index
    %c0_5 = arith.constant 0 : index
    %4 = vector.load %arg3[%c8_4, %c0_5] : memref<128x128xf32, #tpu.memory_space<vmem>>, vector<120x128xf32>
    tpu.vector_store %arg3[%c8_4, %c0_5], %2 {strides = array<i32>} : memref<128x128xf32, #tpu.memory_space<vmem>>, vector<120x128xf32>,
    %c0_6 = arith.constant 0 : index
    %c0_7 = arith.constant 0 : index
    %5 = vector.load %arg2[%c0_6, %c0_7] : memref<128x128xf32, #tpu.memory_space<vmem>>, vector<8x128xf32>
    tpu.vector_store %arg2[%c0_6, %c0_7], %0 {strides = array<i32>} : memref<128x128xf32, #tpu.memory_space<vmem>>, vector<8x128xf32>,
    %c0_8 = arith.constant 0 : index
    %c0_9 = arith.constant 0 : index
    %6 = vector.load %arg3[%c0_8, %c0_9] : memref<128x128xf32, #tpu.memory_space<vmem>>, vector<8x128xf32>
    tpu.vector_store %arg3[%c0_8, %c0_9], %1 {strides = array<i32>} : memref<128x128xf32, #tpu.memory_space<vmem>>, vector<8x128xf32>,
    %c0_10 = arith.constant 0 : index
    %c0_11 = arith.constant 0 : index
    %7 = vector.load %arg3[%c0_10, %c0_11] : memref<128x128xf32, #tpu.memory_space<vmem>>, vector<128x128xf32>
    %cst_12 = arith.constant dense<0.000000e+00> : vector<8x128xf32>
    %8 = tpu.matmul %0, %7, %cst_12 {dimension_numbers = #tpu.dot_dimension_numbers<[1], [0], [0], [1], [0, 0, 1, 1], [], []>} : vector<8x128xf32>, vector<128x128xf32>, vector<8x128xf32> -> vector<8x128xf32>
    %cst_13 = arith.constant dense<0.000000e+00> : vector<8x128xf32>
    %9 = tpu.matmul %1, %7, %cst_13 {dimension_numbers = #tpu.dot_dimension_numbers<[1], [0], [0], [1], [0, 0, 1, 1], [], []>} : vector<8x128xf32>, vector<128x128xf32>, vector<8x128xf32> -> vector<8x128xf32>
    %c0_14 = arith.constant 0 : index
    %c0_15 = arith.constant 0 : index
    %10 = vector.load %arg2[%c0_14, %c0_15] : memref<128x128xf32, #tpu.memory_space<vmem>>, vector<128x128xf32>
    %cst_16 = arith.constant dense<0.000000e+00> : vector<8x128xf32>
    %11 = tpu.matmul %1, %10, %cst_16 {dimension_numbers = #tpu.dot_dimension_numbers<[1], [0], [0], [1], [0, 0, 1, 1], [], []>} : vector<8x128xf32>, vector<128x128xf32>, vector<8x128xf32> -> vector<8x128xf32>
    %c0_17 = arith.constant 0 : index
    %c0_18 = arith.constant 0 : index
    %12 = vector.load %arg2[%c0_17, %c0_18] : memref<128x128xf32, #tpu.memory_space<vmem>>, vector<8x128xf32>
    tpu.vector_store %arg2[%c0_17, %c0_18], %8 {strides = array<i32>} : memref<128x128xf32, #tpu.memory_space<vmem>>, vector<8x128xf32>,
    %c0_19 = arith.constant 0 : index
    %c0_20 = arith.constant 0 : index
    %13 = vector.load %arg2[%c0_19, %c0_20] : memref<128x128xf32, #tpu.memory_space<vmem>>, vector<128x128xf32>
    %cst_21 = arith.constant dense<0.000000e+00> : vector<8x128xf32>
    %14 = tpu.matmul %0, %13, %cst_21 {dimension_numbers = #tpu.dot_dimension_numbers<[1], [0], [0], [1], [0, 0, 1, 1], [], []>} : vector<8x128xf32>, vector<128x128xf32>, vector<8x128xf32> -> vector<8x128xf32>
    %c8_22 = arith.constant 8 : index
    %c0_23 = arith.constant 0 : index
    %15 = vector.load %arg0[%c8_22, %c0_23] : memref<16x128xf32, #tpu.memory_space<vmem>>, vector<8x128xf32>
    %cst_24 = arith.constant dense<0.000000e+00> : vector<8x128xf32>
    %16 = tpu.matmul %15, %13, %cst_24 {dimension_numbers = #tpu.dot_dimension_numbers<[1], [0], [0], [1], [0, 0, 1, 1], [], []>} : vector<8x128xf32>, vector<128x128xf32>, vector<8x128xf32> -> vector<8x128xf32>
    %c0_25 = arith.constant 0 : index
    %c0_26 = arith.constant 0 : index
    %17 = vector.load %arg3[%c0_25, %c0_26] : memref<128x128xf32, #tpu.memory_space<vmem>>, vector<8x128xf32>
    tpu.vector_store %arg3[%c0_25, %c0_26], %9 {strides = array<i32>} : memref<128x128xf32, #tpu.memory_space<vmem>>, vector<8x128xf32>,
    %c0_27 = arith.constant 0 : index
    %c0_28 = arith.constant 0 : index
    %18 = vector.load %arg3[%c0_27, %c0_28] : memref<128x128xf32, #tpu.memory_space<vmem>>, vector<128x128xf32>
    %cst_29 = arith.constant dense<0.000000e+00> : vector<8x128xf32>
    %19 = tpu.matmul %8, %18, %cst_29 {dimension_numbers = #tpu.dot_dimension_numbers<[1], [0], [0], [1], [0, 0, 1, 1], [], []>} : vector<8x128xf32>, vector<128x128xf32>, vector<8x128xf32> -> vector<8x128xf32>
    %c0_30 = arith.constant 0 : index
    %c0_31 = arith.constant 0 : index
    %20 = vector.load %arg1[%c0_30, %c0_31] : memref<48x128xf32, #tpu.memory_space<vmem>>, vector<8x128xf32>
    tpu.vector_store %arg1[%c0_30, %c0_31], %11 {strides = array<i32>} : memref<48x128xf32, #tpu.memory_space<vmem>>, vector<8x128xf32>,
    %c8_32 = arith.constant 8 : index
    %c0_33 = arith.constant 0 : index
    %21 = vector.load %arg1[%c8_32, %c0_33] : memref<48x128xf32, #tpu.memory_space<vmem>>, vector<8x128xf32>
    tpu.vector_store %arg1[%c8_32, %c0_33], %14 {strides = array<i32>} : memref<48x128xf32, #tpu.memory_space<vmem>>, vector<8x128xf32>,
    %c16 = arith.constant 16 : index
    %c0_34 = arith.constant 0 : index
    %22 = vector.load %arg1[%c16, %c0_34] : memref<48x128xf32, #tpu.memory_space<vmem>>, vector<8x128xf32>
    tpu.vector_store %arg1[%c16, %c0_34], %9 {strides = array<i32>} : memref<48x128xf32, #tpu.memory_space<vmem>>, vector<8x128xf32>,
    %c24 = arith.constant 24 : index
    %c0_35 = arith.constant 0 : index
    %23 = vector.load %arg1[%c24, %c0_35] : memref<48x128xf32, #tpu.memory_space<vmem>>, vector<8x128xf32>
    tpu.vector_store %arg1[%c24, %c0_35], %19 {strides = array<i32>} : memref<48x128xf32, #tpu.memory_space<vmem>>, vector<8x128xf32>,
    %c32 = arith.constant 32 : index
    %c0_36 = arith.constant 0 : index
    %24 = vector.load %arg1[%c32, %c0_36] : memref<48x128xf32, #tpu.memory_space<vmem>>, vector<8x128xf32>
    tpu.vector_store %arg1[%c32, %c0_36], %8 {strides = array<i32>} : memref<48x128xf32, #tpu.memory_space<vmem>>, vector<8x128xf32>,
    %c40 = arith.constant 40 : index
    %c0_37 = arith.constant 0 : index
    %25 = vector.load %arg1[%c40, %c0_37] : memref<48x128xf32, #tpu.memory_space<vmem>>, vector<8x128xf32>
    tpu.vector_store %arg1[%c40, %c0_37], %16 {strides = array<i32>} : memref<48x128xf32, #tpu.memory_space<vmem>>, vector<8x128xf32>,
    return
  }
}

</mosaic_0001>

<llo_original>
// kernel: _forward_impl.1
$region0: #{_forward_impl.1}
  #allocation0 [shape = 'u32[]', space=smem, size = 0x4, offset = 0x4, fixed_abs, tag = 'smem constant byte address 0x4 - core index']
  #allocation1 [shape = 'u32[144,128]{1,0:T(1,128)}', space=vmem, size = 0x12000, scoped, tag = 'internal scratch']
  #allocation2 [shape = 'f32[128,128]{1,0:T(8,128)}', space=vmem, size = 0x10000, scoped, tag = 'scratch operand']
  #allocation3 [shape = 'f32[128,128]{1,0:T(8,128)}', space=vmem, size = 0x10000, scoped, tag = 'scratch operand']
  %s0 = inlined_call_operand.vmem [shape: f32[16,128], index: 0, kind: input, shape index: {}]
  %s1 = inlined_call_operand.vmem [shape: f32[48,128], index: 1, kind: output, shape index: {}]
  %s2 = sld [smem:[#allocation0]]
  $region14: #{_forward_impl.1} parent=0
    _
  %s4 = ssub.s32 1, %s2
  %s5 = scalar_select 0, %s4, %s2
  // Predicated region
  $region2: #{_forward_impl.1} parent=0 // pred_check
    _
  $region3: #{_forward_impl.1} parent=0 // pred_check_branch
    %7 = sbr.rel (0) target = $region5
  $region4: #{_forward_impl.1} parent=0 // pred_region
    _
  $region5: #{_forward_impl.1} parent=0 // pred_fallthru
    _
  %v8 = vld [vmem:[%s0] sm:$0xff]
  %v9 = vld [vmem:[%s0 + $0x8] sm:$0xff]
  %10 = vst [vmem:[#allocation2 + $0x8] sm:$0xff] 0.0
  %11 = vst [vmem:[#allocation2 + $0x10] sm:$0xff] 0.0
  %12 = vst [vmem:[#allocation2 + $0x18] sm:$0xff] 0.0
  %13 = vst [vmem:[#allocation2 + $0x20] sm:$0xff] 0.0
  %14 = vst [vmem:[#allocation2 + $0x28] sm:$0xff] 0.0
  %15 = vst [vmem:[#allocation2 + $0x30] sm:$0xff] 0.0
  %16 = vst [vmem:[#allocation2 + $0x38] sm:$0xff] 0.0
  %17 = vst [vmem:[#allocation2 + $0x40] sm:$0xff] 0.0
  %18 = vst [vmem:[#allocation2 + $0x48] sm:$0xff] 0.0
  %19 = vst [vmem:[#allocation2 + $0x50] sm:$0xff] 0.0
  %20 = vst [vmem:[#allocation2 + $0x58] sm:$0xff] 0.0
  %21 = vst [vmem:[#allocation2 + $0x60] sm:$0xff] 0.0
  %22 = vst [vmem:[#allocation2 + $0x68] sm:$0xff] 0.0
  %23 = vst [vmem:[#allocation2 + $0x70] sm:$0xff] 0.0
  %24 = vst [vmem:[#allocation2 + $0x78] sm:$0xff] 0.0
  %25 = vst [vmem:[#allocation3 + $0x8] sm:$0xff] 0.0
  %26 = vst [vmem:[#allocation3 + $0x10] sm:$0xff] 0.0
  %27 = vst [vmem:[#allocation3 + $0x18] sm:$0xff] 0.0
  %28 = vst [vmem:[#allocation3 + $0x20] sm:$0xff] 0.0
  %29 = vst [vmem:[#allocation3 + $0x28] sm:$0xff] 0.0
  %30 = vst [vmem:[#allocation3 + $0x30] sm:$0xff] 0.0
  %31 = vst [vmem:[#allocation3 + $0x38] sm:$0xff] 0.0
  %32 = vst [vmem:[#allocation3 + $0x40] sm:$0xff] 0.0
  %33 = vst [vmem:[#allocation3 + $0x48] sm:$0xff] 0.0
  %34 = vst [vmem:[#allocation3 + $0x50] sm:$0xff] 0.0
  %35 = vst [vmem:[#allocation3 + $0x58] sm:$0xff] 0.0
  %36 = vst [vmem:[#allocation3 + $0x60] sm:$0xff] 0.0
  %37 = vst [vmem:[#allocation3 + $0x68] sm:$0xff] 0.0
  %38 = vst [vmem:[#allocation3 + $0x70] sm:$0xff] 0.0
  %39 = vst [vmem:[#allocation3 + $0x78] sm:$0xff] 0.0
  %40 = vst [vmem:[#allocation2] sm:$0xff] %v8
  %41 = vst [vmem:[#allocation3] sm:$0xff] %v9
  %v42 = vld [vmem:[#allocation3] sm:$0xff]
  %v43 = vld [vmem:[#allocation3 + $0x8] sm:$0xff]
  %v44 = vld [vmem:[#allocation3 + $0x10] sm:$0xff]
  %v45 = vld [vmem:[#allocation3 + $0x18] sm:$0xff]
  %v46 = vld [vmem:[#allocation3 + $0x20] sm:$0xff]
  %v47 = vld [vmem:[#allocation3 + $0x28] sm:$0xff]
  %v48 = vld [vmem:[#allocation3 + $0x30] sm:$0xff]
  %v49 = vld [vmem:[#allocation3 + $0x38] sm:$0xff]
  %v50 = vld [vmem:[#allocation3 + $0x40] sm:$0xff]
  %v51 = vld [vmem:[#allocation3 + $0x48] sm:$0xff]
  %v52 = vld [vmem:[#allocation3 + $0x50] sm:$0xff]
  %v53 = vld [vmem:[#allocation3 + $0x58] sm:$0xff]
  %v54 = vld [vmem:[#allocation3 + $0x60] sm:$0xff]
  %v55 = vld [vmem:[#allocation3 + $0x68] sm:$0xff]
  %v56 = vld [vmem:[#allocation3 + $0x70] sm:$0xff]
  %v57 = vld [vmem:[#allocation3 + $0x78] sm:$0xff]
  %58 = vmatprep.subr.mxu0 0.0
  %59 = vmatpush1.msra.mxu0 %v42
  %60 = vmatprep.subr.mxu0 0.0
  %61 = vmatpush1.msra.mxu0 %v43
  %62 = vmatprep.subr.mxu0 0.0
  %63 = vmatpush1.msra.mxu0 %v44
  %64 = vmatprep.subr.mxu0 0.0
  %65 = vmatpush1.msra.mxu0 %v45
  %66 = vmatprep.subr.mxu0 0.0
  %67 = vmatpush1.msra.mxu0 %v46
  %68 = vmatprep.subr.mxu0 0.0
  %69 = vmatpush1.msra.mxu0 %v47
  %70 = vmatprep.subr.mxu0 0.0
  %71 = vmatpush1.msra.mxu0 %v48
  %72 = vmatprep.subr.mxu0 0.0
  %73 = vmatpush1.msra.mxu0 %v49
  %74 = vmatprep.subr.mxu0 0.0
  %75 = vmatpush1.msra.mxu0 %v50
  %76 = vmatprep.subr.mxu0 0.0
  %77 = vmatpush1.msra.mxu0 %v51
  %78 = vmatprep.subr.mxu0 0.0
  %79 = vmatpush1.msra.mxu0 %v52
  %80 = vmatprep.subr.mxu0 0.0
  %81 = vmatpush1.msra.mxu0 %v53
  %82 = vmatprep.subr.mxu0 0.0
  %83 = vmatpush1.msra.mxu0 %v54
  %84 = vmatprep.subr.mxu0 0.0
  %85 = vmatpush1.msra.mxu0 %v55
  %86 = vmatprep.subr.mxu0 0.0
  %87 = vmatpush1.msra.mxu0 %v56
  %88 = vmatprep.subr.mxu0 0.0
  %89 = vmatpush1.msra.mxu0 %v57
  %90 = vmatprep.subr.mxu0 0.0
  %91 = vmatpush1.msra.mxu0 0.0
  %92 = vmatprep.subr.mxu0 0.0
  %93 = vmatpush1.msra.mxu0 0.0
  %94 = vmatprep.subr.mxu0 0.0
  %95 = vmatpush1.msra.mxu0 0.0
  %96 = vmatprep.subr.mxu0 0.0
  %97 = vmatpush1.msra.mxu0 0.0
  %98 = vmatprep.subr.mxu0 0.0
  %99 = vmatpush1.msra.mxu0 0.0
  %100 = vmatprep.subr.mxu0 0.0
  %101 = vmatpush1.msra.mxu0 0.0
  %102 = vmatprep.subr.mxu0 0.0
  %103 = vmatpush1.msra.mxu0 0.0
  %104 = vmatprep.subr.mxu0 0.0
  %105 = vmatpush1.msra.mxu0 0.0
  %106 = vmatprep.subr.mxu0 0.0
  %107 = vmatpush1.msra.mxu0 0.0
  %108 = vmatprep.subr.mxu0 0.0
  %109 = vmatpush1.msra.mxu0 0.0
  %110 = vmatprep.subr.mxu0 0.0
  %111 = vmatpush1.msra.mxu0 0.0
  %112 = vmatprep.subr.mxu0 0.0
  %113 = vmatpush1.msra.mxu0 0.0
  %114 = vmatprep.subr.mxu0 0.0
  %115 = vmatpush1.msra.mxu0 0.0
  %116 = vmatprep.subr.mxu0 0.0
  %117 = vmatpush1.msra.mxu0 0.0
  %118 = vmatprep.subr.mxu0 0.0
  %119 = vmatpush1.msra.mxu0 0.0
  %120 = vmatprep.subr.mxu0 0.0
  %121 = vmatpush1.msra.mxu0 0.0
  %122 = vmatprep.mubr.f32.mxu0 0.0
  %123 = vmatmul.mubr.f32.gmra.mrb[0].mxu0 %v8
  %v124 = vpop.f32.mrb[0].mxu0
  %v125 = vadd.f32 0.0, %v124
  %v126 = vpop.f32.mrb[0].mxu0
  %127 = vdwg.mxu0
  %128 = vmatprep.subr.mxu0 0.0
  %129 = vmatpush1.msra.mxu0 %v42
  %130 = vmatprep.subr.mxu0 0.0
  %131 = vmatpush1.msra.mxu0 %v43
  %132 = vmatprep.subr.mxu0 0.0
  %133 = vmatpush1.msra.mxu0 %v44
  %134 = vmatprep.subr.mxu0 0.0
  %135 = vmatpush1.msra.mxu0 %v45
  %136 = vmatprep.subr.mxu0 0.0
  %137 = vmatpush1.msra.mxu0 %v46
  %138 = vmatprep.subr.mxu0 0.0
  %139 = vmatpush1.msra.mxu0 %v47
  %140 = vmatprep.subr.mxu0 0.0
  %141 = vmatpush1.msra.mxu0 %v48
  %142 = vmatprep.subr.mxu0 0.0
  %143 = vmatpush1.msra.mxu0 %v49
  %144 = vmatprep.subr.mxu0 0.0
  %145 = vmatpush1.msra.mxu0 %v50
  %146 = vmatprep.subr.mxu0 0.0
  %147 = vmatpush1.msra.mxu0 %v51
  %148 = vmatprep.subr.mxu0 0.0
  %149 = vmatpush1.msra.mxu0 %v52
  %150 = vmatprep.subr.mxu0 0.0
  %151 = vmatpush1.msra.mxu0 %v53
  %152 = vmatprep.subr.mxu0 0.0
  %153 = vmatpush1.msra.mxu0 %v54
  %154 = vmatprep.subr.mxu0 0.0
  %155 = vmatpush1.msra.mxu0 %v55
  %156 = vmatprep.subr.mxu0 0.0
  %157 = vmatpush1.msra.mxu0 %v56
  %158 = vmatprep.subr.mxu0 0.0
  %159 = vmatpush1.msra.mxu0 %v57
  %160 = vmatprep.subr.mxu0 0.0
  %161 = vmatpush1.msra.mxu0 0.0
  %162 = vmatprep.subr.mxu0 0.0
  %163 = vmatpush1.msra.mxu0 0.0
  %164 = vmatprep.subr.mxu0 0.0
  %165 = vmatpush1.msra.mxu0 0.0
  %166 = vmatprep.subr.mxu0 0.0
  %167 = vmatpush1.msra.mxu0 0.0
  %168 = vmatprep.subr.mxu0 0.0
  %169 = vmatpush1.msra.mxu0 0.0
  %170 = vmatprep.subr.mxu0 0.0
  %171 = vmatpush1.msra.mxu0 0.0
  %172 = vmatprep.subr.mxu0 0.0
  %173 = vmatpush1.msra.mxu0 0.0
  %174 = vmatprep.subr.mxu0 0.0
  %175 = vmatpush1.msra.mxu0 0.0
  %176 = vmatprep.subr.mxu0 0.0
  %177 = vmatpush1.msra.mxu0 0.0
  %178 = vmatprep.subr.mxu0 0.0
  %179 = vmatpush1.msra.mxu0 0.0
  %180 = vmatprep.subr.mxu0 0.0
  %181 = vmatpush1.msra.mxu0 0.0
  %182 = vmatprep.subr.mxu0 0.0
  %183 = vmatpush1.msra.mxu0 0.0
  %184 = vmatprep.subr.mxu0 0.0
  %185 = vmatpush1.msra.mxu0 0.0
  %186 = vmatprep.subr.mxu0 0.0
  %187 = vmatpush1.msra.mxu0 0.0
  %188 = vmatprep.subr.mxu0 0.0
  %189 = vmatpush1.msra.mxu0 0.0
  %190 = vmatprep.subr.mxu0 0.0
  %191 = vmatpush1.msra.mxu0 0.0
  %192 = vmatprep.mubr.f32.mxu0 0.0
  %193 = vmatmul.mubr.f32.gmra.mrb[0].mxu0 %v9
  %v194 = vpop.f32.mrb[0].mxu0
  %v195 = vadd.f32 0.0, %v194
  %v196 = vpop.f32.mrb[0].mxu0
  %197 = vdwg.mxu0
  %v198 = vld [vmem:[#allocation2] sm:$0xff]
  %v199 = vld [vmem:[#allocation2 + $0x8] sm:$0xff]
  %v200 = vld [vmem:[#allocation2 + $0x10] sm:$0xff]
  %v201 = vld [vmem:[#allocation2 + $0x18] sm:$0xff]
  %v202 = vld [vmem:[#allocation2 + $0x20] sm:$0xff]
  %v203 = vld [vmem:[#allocation2 + $0x28] sm:$0xff]
  %v204 = vld [vmem:[#allocation2 + $0x30] sm:$0xff]
  %v205 = vld [vmem:[#allocation2 + $0x38] sm:$0xff]
  %v206 = vld [vmem:[#allocation2 + $0x40] sm:$0xff]
  %v207 = vld [vmem:[#allocation2 + $0x48] sm:$0xff]
  %v208 = vld [vmem:[#allocation2 + $0x50] sm:$0xff]
  %v209 = vld [vmem:[#allocation2 + $0x58] sm:$0xff]
  %v210 = vld [vmem:[#allocation2 + $0x60] sm:$0xff]
  %v211 = vld [vmem:[#allocation2 + $0x68] sm:$0xff]
  %v212 = vld [vmem:[#allocation2 + $0x70] sm:$0xff]
  %v213 = vld [vmem:[#allocation2 + $0x78] sm:$0xff]
  %214 = vmatprep.subr.mxu0 0.0
  %215 = vmatpush1.msra.mxu0 %v198
  %216 = vmatprep.subr.mxu0 0.0
  %217 = vmatpush1.msra.mxu0 %v199
  %218 = vmatprep.subr.mxu0 0.0
  %219 = vmatpush1.msra.mxu0 %v200
  %220 = vmatprep.subr.mxu0 0.0
  %221 = vmatpush1.msra.mxu0 %v201
  %222 = vmatprep.subr.mxu0 0.0
  %223 = vmatpush1.msra.mxu0 %v202
  %224 = vmatprep.subr.mxu0 0.0
  %225 = vmatpush1.msra.mxu0 %v203
  %226 = vmatprep.subr.mxu0 0.0
  %227 = vmatpush1.msra.mxu0 %v204
  %228 = vmatprep.subr.mxu0 0.0
  %229 = vmatpush1.msra.mxu0 %v205
  %230 = vmatprep.subr.mxu0 0.0
  %231 = vmatpush1.msra.mxu0 %v206
  %232 = vmatprep.subr.mxu0 0.0
  %233 = vmatpush1.msra.mxu0 %v207
  %234 = vmatprep.subr.mxu0 0.0
  %235 = vmatpush1.msra.mxu0 %v208
  %236 = vmatprep.subr.mxu0 0.0
  %237 = vmatpush1.msra.mxu0 %v209
  %238 = vmatprep.subr.mxu0 0.0
  %239 = vmatpush1.msra.mxu0 %v210
  %240 = vmatprep.subr.mxu0 0.0
  %241 = vmatpush1.msra.mxu0 %v211
  %242 = vmatprep.subr.mxu0 0.0
  %243 = vmatpush1.msra.mxu0 %v212
  %244 = vmatprep.subr.mxu0 0.0
  %245 = vmatpush1.msra.mxu0 %v213
  %246 = vmatprep.subr.mxu0 0.0
  %247 = vmatpush1.msra.mxu0 0.0
  %248 = vmatprep.subr.mxu0 0.0
  %249 = vmatpush1.msra.mxu0 0.0
  %250 = vmatprep.subr.mxu0 0.0
  %251 = vmatpush1.msra.mxu0 0.0
  %252 = vmatprep.subr.mxu0 0.0
  %253 = vmatpush1.msra.mxu0 0.0
  %254 = vmatprep.subr.mxu0 0.0
  %255 = vmatpush1.msra.mxu0 0.0
  %256 = vmatprep.subr.mxu0 0.0
  %257 = vmatpush1.msra.mxu0 0.0
  %258 = vmatprep.subr.mxu0 0.0
  %259 = vmatpush1.msra.mxu0 0.0
  %260 = vmatprep.subr.mxu0 0.0
  %261 = vmatpush1.msra.mxu0 0.0
  %262 = vmatprep.subr.mxu0 0.0
  %263 = vmatpush1.msra.mxu0 0.0
  %264 = vmatprep.subr.mxu0 0.0
  %265 = vmatpush1.msra.mxu0 0.0
  %266 = vmatprep.subr.mxu0 0.0
  %267 = vmatpush1.msra.mxu0 0.0
  %268 = vmatprep.subr.mxu0 0.0
  %269 = vmatpush1.msra.mxu0 0.0
  %270 = vmatprep.subr.mxu0 0.0
  %271 = vmatpush1.msra.mxu0 0.0
  %272 = vmatprep.subr.mxu0 0.0
  %273 = vmatpush1.msra.mxu0 0.0
  %274 = vmatprep.subr.mxu0 0.0
  %275 = vmatpush1.msra.mxu0 0.0
  %276 = vmatprep.subr.mxu0 0.0
  %277 = vmatpush1.msra.mxu0 0.0
  %278 = vmatprep.mubr.f32.mxu0 0.0
  %279 = vmatmul.mubr.f32.gmra.mrb[0].mxu0 %v9
  %v280 = vpop.f32.mrb[0].mxu0
  %v281 = vadd.f32 0.0, %v280
  %v282 = vpop.f32.mrb[0].mxu0
  %283 = vdwg.mxu0
  %284 = vst [vmem:[#allocation2] sm:$0xff] %v125
  %v285 = vld [vmem:[#allocation2] sm:$0xff]
  %v286 = vld [vmem:[#allocation2 + $0x8] sm:$0xff]
  %v287 = vld [vmem:[#allocation2 + $0x10] sm:$0xff]
  %v288 = vld [vmem:[#allocation2 + $0x18] sm:$0xff]
  %v289 = vld [vmem:[#allocation2 + $0x20] sm:$0xff]
  %v290 = vld [vmem:[#allocation2 + $0x28] sm:$0xff]
  %v291 = vld [vmem:[#allocation2 + $0x30] sm:$0xff]
  %v292 = vld [vmem:[#allocation2 + $0x38] sm:$0xff]
  %v293 = vld [vmem:[#allocation2 + $0x40] sm:$0xff]
  %v294 = vld [vmem:[#allocation2 + $0x48] sm:$0xff]
  %v295 = vld [vmem:[#allocation2 + $0x50] sm:$0xff]
  %v296 = vld [vmem:[#allocation2 + $0x58] sm:$0xff]
  %v297 = vld [vmem:[#allocation2 + $0x60] sm:$0xff]
  %v298 = vld [vmem:[#allocation2 + $0x68] sm:$0xff]
  %v299 = vld [vmem:[#allocation2 + $0x70] sm:$0xff]
  %v300 = vld [vmem:[#allocation2 + $0x78] sm:$0xff]
  %301 = vmatprep.subr.mxu0 0.0
  %302 = vmatpush1.msra.mxu0 %v285
  %303 = vmatprep.subr.mxu0 0.0
  %304 = vmatpush1.msra.mxu0 %v286
  %305 = vmatprep.subr.mxu0 0.0
  %306 = vmatpush1.msra.mxu0 %v287
  %307 = vmatprep.subr.mxu0 0.0
  %308 = vmatpush1.msra.mxu0 %v288
  %309 = vmatprep.subr.mxu0 0.0
  %310 = vmatpush1.msra.mxu0 %v289
  %311 = vmatprep.subr.mxu0 0.0
  %312 = vmatpush1.msra.mxu0 %v290
  %313 = vmatprep.subr.mxu0 0.0
  %314 = vmatpush1.msra.mxu0 %v291
  %315 = vmatprep.subr.mxu0 0.0
  %316 = vmatpush1.msra.mxu0 %v292
  %317 = vmatprep.subr.mxu0 0.0
  %318 = vmatpush1.msra.mxu0 %v293
  %319 = vmatprep.subr.mxu0 0.0
  %320 = vmatpush1.msra.mxu0 %v294
  %321 = vmatprep.subr.mxu0 0.0
  %322 = vmatpush1.msra.mxu0 %v295
  %323 = vmatprep.subr.mxu0 0.0
  %324 = vmatpush1.msra.mxu0 %v296
  %325 = vmatprep.subr.mxu0 0.0
  %326 = vmatpush1.msra.mxu0 %v297
  %327 = vmatprep.subr.mxu0 0.0
  %328 = vmatpush1.msra.mxu0 %v298
  %329 = vmatprep.subr.mxu0 0.0
  %330 = vmatpush1.msra.mxu0 %v299
  %331 = vmatprep.subr.mxu0 0.0
  %332 = vmatpush1.msra.mxu0 %v300
  %333 = vmatprep.subr.mxu0 0.0
  %334 = vmatpush1.msra.mxu0 0.0
  %335 = vmatprep.subr.mxu0 0.0
  %336 = vmatpush1.msra.mxu0 0.0
  %337 = vmatprep.subr.mxu0 0.0
  %338 = vmatpush1.msra.mxu0 0.0
  %339 = vmatprep.subr.mxu0 0.0
  %340 = vmatpush1.msra.mxu0 0.0
  %341 = vmatprep.subr.mxu0 0.0
  %342 = vmatpush1.msra.mxu0 0.0
  %343 = vmatprep.subr.mxu0 0.0
  %344 = vmatpush1.msra.mxu0 0.0
  %345 = vmatprep.subr.mxu0 0.0
  %346 = vmatpush1.msra.mxu0 0.0
  %347 = vmatprep.subr.mxu0 0.0
  %348 = vmatpush1.msra.mxu0 0.0
  %349 = vmatprep.subr.mxu0 0.0
  %350 = vmatpush1.msra.mxu0 0.0
  %351 = vmatprep.subr.mxu0 0.0
  %352 = vmatpush1.msra.mxu0 0.0
  %353 = vmatprep.subr.mxu0 0.0
  %354 = vmatpush1.msra.mxu0 0.0
  %355 = vmatprep.subr.mxu0 0.0
  %356 = vmatpush1.msra.mxu0 0.0
  %357 = vmatprep.subr.mxu0 0.0
  %358 = vmatpush1.msra.mxu0 0.0
  %359 = vmatprep.subr.mxu0 0.0
  %360 = vmatpush1.msra.mxu0 0.0
  %361 = vmatprep.subr.mxu0 0.0
  %362 = vmatpush1.msra.mxu0 0.0
  %363 = vmatprep.subr.mxu0 0.0
  %364 = vmatpush1.msra.mxu0 0.0
  %365 = vmatprep.mubr.f32.mxu0 0.0
  %366 = vmatmul.mubr.f32.gmra.mrb[0].mxu0 %v8
  %v367 = vpop.f32.mrb[0].mxu0
  %v368 = vadd.f32 0.0, %v367
  %v369 = vpop.f32.mrb[0].mxu0
  %370 = vdwg.mxu0
  %v371 = vld [vmem:[%s0 + $0x8] sm:$0xff]
  %372 = vmatprep.subr.mxu0 0.0
  %373 = vmatpush1.msra.mxu0 %v285
  %374 = vmatprep.subr.mxu0 0.0
  %375 = vmatpush1.msra.mxu0 %v286
  %376 = vmatprep.subr.mxu0 0.0
  %377 = vmatpush1.msra.mxu0 %v287
  %378 = vmatprep.subr.mxu0 0.0
  %379 = vmatpush1.msra.mxu0 %v288
  %380 = vmatprep.subr.mxu0 0.0
  %381 = vmatpush1.msra.mxu0 %v289
  %382 = vmatprep.subr.mxu0 0.0
  %383 = vmatpush1.msra.mxu0 %v290
  %384 = vmatprep.subr.mxu0 0.0
  %385 = vmatpush1.msra.mxu0 %v291
  %386 = vmatprep.subr.mxu0 0.0
  %387 = vmatpush1.msra.mxu0 %v292
  %388 = vmatprep.subr.mxu0 0.0
  %389 = vmatpush1.msra.mxu0 %v293
  %390 = vmatprep.subr.mxu0 0.0
  %391 = vmatpush1.msra.mxu0 %v294
  %392 = vmatprep.subr.mxu0 0.0
  %393 = vmatpush1.msra.mxu0 %v295
  %394 = vmatprep.subr.mxu0 0.0
  %395 = vmatpush1.msra.mxu0 %v296
  %396 = vmatprep.subr.mxu0 0.0
  %397 = vmatpush1.msra.mxu0 %v297
  %398 = vmatprep.subr.mxu0 0.0
  %399 = vmatpush1.msra.mxu0 %v298
  %400 = vmatprep.subr.mxu0 0.0
  %401 = vmatpush1.msra.mxu0 %v299
  %402 = vmatprep.subr.mxu0 0.0
  %403 = vmatpush1.msra.mxu0 %v300
  %404 = vmatprep.subr.mxu0 0.0
  %405 = vmatpush1.msra.mxu0 0.0
  %406 = vmatprep.subr.mxu0 0.0
  %407 = vmatpush1.msra.mxu0 0.0
  %408 = vmatprep.subr.mxu0 0.0
  %409 = vmatpush1.msra.mxu0 0.0
  %410 = vmatprep.subr.mxu0 0.0
  %411 = vmatpush1.msra.mxu0 0.0
  %412 = vmatprep.subr.mxu0 0.0
  %413 = vmatpush1.msra.mxu0 0.0
  %414 = vmatprep.subr.mxu0 0.0
  %415 = vmatpush1.msra.mxu0 0.0
  %416 = vmatprep.subr.mxu0 0.0
  %417 = vmatpush1.msra.mxu0 0.0
  %418 = vmatprep.subr.mxu0 0.0
  %419 = vmatpush1.msra.mxu0 0.0
  %420 = vmatprep.subr.mxu0 0.0
  %421 = vmatpush1.msra.mxu0 0.0
  %422 = vmatprep.subr.mxu0 0.0
  %423 = vmatpush1.msra.mxu0 0.0
  %424 = vmatprep.subr.mxu0 0.0
  %425 = vmatpush1.msra.mxu0 0.0
  %426 = vmatprep.subr.mxu0 0.0
  %427 = vmatpush1.msra.mxu0 0.0
  %428 = vmatprep.subr.mxu0 0.0
  %429 = vmatpush1.msra.mxu0 0.0
  %430 = vmatprep.subr.mxu0 0.0
  %431 = vmatpush1.msra.mxu0 0.0
  %432 = vmatprep.subr.mxu0 0.0
  %433 = vmatpush1.msra.mxu0 0.0
  %434 = vmatprep.subr.mxu0 0.0
  %435 = vmatpush1.msra.mxu0 0.0
  %436 = vmatprep.mubr.f32.mxu0 0.0
  %437 = vmatmul.mubr.f32.gmra.mrb[0].mxu0 %v371
  %v438 = vpop.f32.mrb[0].mxu0
  %v439 = vadd.f32 0.0, %v438
  %v440 = vpop.f32.mrb[0].mxu0
  %441 = vdwg.mxu0
  %442 = vst [vmem:[#allocation3] sm:$0xff] %v195
  %v443 = vld [vmem:[#allocation3] sm:$0xff]
  %v444 = vld [vmem:[#allocation3 + $0x8] sm:$0xff]
  %v445 = vld [vmem:[#allocation3 + $0x10] sm:$0xff]
  %v446 = vld [vmem:[#allocation3 + $0x18] sm:$0xff]
  %v447 = vld [vmem:[#allocation3 + $0x20] sm:$0xff]
  %v448 = vld [vmem:[#allocation3 + $0x28] sm:$0xff]
  %v449 = vld [vmem:[#allocation3 + $0x30] sm:$0xff]
  %v450 = vld [vmem:[#allocation3 + $0x38] sm:$0xff]
  %v451 = vld [vmem:[#allocation3 + $0x40] sm:$0xff]
  %v452 = vld [vmem:[#allocation3 + $0x48] sm:$0xff]
  %v453 = vld [vmem:[#allocation3 + $0x50] sm:$0xff]
  %v454 = vld [vmem:[#allocation3 + $0x58] sm:$0xff]
  %v455 = vld [vmem:[#allocation3 + $0x60] sm:$0xff]
  %v456 = vld [vmem:[#allocation3 + $0x68] sm:$0xff]
  %v457 = vld [vmem:[#allocation3 + $0x70] sm:$0xff]
  %v458 = vld [vmem:[#allocation3 + $0x78] sm:$0xff]
  %459 = vmatprep.subr.mxu0 0.0
  %460 = vmatpush1.msra.mxu0 %v443
  %461 = vmatprep.subr.mxu0 0.0
  %462 = vmatpush1.msra.mxu0 %v444
  %463 = vmatprep.subr.mxu0 0.0
  %464 = vmatpush1.msra.mxu0 %v445
  %465 = vmatprep.subr.mxu0 0.0
  %466 = vmatpush1.msra.mxu0 %v446
  %467 = vmatprep.subr.mxu0 0.0
  %468 = vmatpush1.msra.mxu0 %v447
  %469 = vmatprep.subr.mxu0 0.0
  %470 = vmatpush1.msra.mxu0 %v448
  %471 = vmatprep.subr.mxu0 0.0
  %472 = vmatpush1.msra.mxu0 %v449
  %473 = vmatprep.subr.mxu0 0.0
  %474 = vmatpush1.msra.mxu0 %v450
  %475 = vmatprep.subr.mxu0 0.0
  %476 = vmatpush1.msra.mxu0 %v451
  %477 = vmatprep.subr.mxu0 0.0
  %478 = vmatpush1.msra.mxu0 %v452
  %479 = vmatprep.subr.mxu0 0.0
  %480 = vmatpush1.msra.mxu0 %v453
  %481 = vmatprep.subr.mxu0 0.0
  %482 = vmatpush1.msra.mxu0 %v454
  %483 = vmatprep.subr.mxu0 0.0
  %484 = vmatpush1.msra.mxu0 %v455
  %485 = vmatprep.subr.mxu0 0.0
  %486 = vmatpush1.msra.mxu0 %v456
  %487 = vmatprep.subr.mxu0 0.0
  %488 = vmatpush1.msra.mxu0 %v457
  %489 = vmatprep.subr.mxu0 0.0
  %490 = vmatpush1.msra.mxu0 %v458
  %491 = vmatprep.subr.mxu0 0.0
  %492 = vmatpush1.msra.mxu0 0.0
  %493 = vmatprep.subr.mxu0 0.0
  %494 = vmatpush1.msra.mxu0 0.0
  %495 = vmatprep.subr.mxu0 0.0
  %496 = vmatpush1.msra.mxu0 0.0
  %497 = vmatprep.subr.mxu0 0.0
  %498 = vmatpush1.msra.mxu0 0.0
  %499 = vmatprep.subr.mxu0 0.0
  %500 = vmatpush1.msra.mxu0 0.0
  %501 = vmatprep.subr.mxu0 0.0
  %502 = vmatpush1.msra.mxu0 0.0
  %503 = vmatprep.subr.mxu0 0.0
  %504 = vmatpush1.msra.mxu0 0.0
  %505 = vmatprep.subr.mxu0 0.0
  %506 = vmatpush1.msra.mxu0 0.0
  %507 = vmatprep.subr.mxu0 0.0
  %508 = vmatpush1.msra.mxu0 0.0
  %509 = vmatprep.subr.mxu0 0.0
  %510 = vmatpush1.msra.mxu0 0.0
  %511 = vmatprep.subr.mxu0 0.0
  %512 = vmatpush1.msra.mxu0 0.0
  %513 = vmatprep.subr.mxu0 0.0
  %514 = vmatpush1.msra.mxu0 0.0
  %515 = vmatprep.subr.mxu0 0.0
  %516 = vmatpush1.msra.mxu0 0.0
  %517 = vmatprep.subr.mxu0 0.0
  %518 = vmatpush1.msra.mxu0 0.0
  %519 = vmatprep.subr.mxu0 0.0
  %520 = vmatpush1.msra.mxu0 0.0
  %521 = vmatprep.subr.mxu0 0.0
  %522 = vmatpush1.msra.mxu0 0.0
  %523 = vmatprep.mubr.f32.mxu0 0.0
  %524 = vmatmul.mubr.f32.gmra.mrb[0].mxu0 %v125
  %v525 = vpop.f32.mrb[0].mxu0
  %v526 = vadd.f32 0.0, %v525
  %v527 = vpop.f32.mrb[0].mxu0
  %528 = vdwg.mxu0
  %529 = vst [vmem:[%s1] sm:$0xff] %v281
  %530 = vst [vmem:[%s1 + $0x8] sm:$0xff] %v368
  %531 = vst [vmem:[%s1 + $0x10] sm:$0xff] %v195
  %532 = vst [vmem:[%s1 + $0x18] sm:$0xff] %v526
  %533 = vst [vmem:[%s1 + $0x20] sm:$0xff] %v125
  %534 = vst [vmem:[%s1 + $0x28] sm:$0xff] %v439
  // Predicated region
  $region6: #{_forward_impl.1} parent=0 // pred_check
    _
  $region7: #{_forward_impl.1} parent=0 // pred_check_branch
    %536 = sbr.rel (0) target = $region9
  $region8: #{_forward_impl.1} parent=0 // pred_region
    _
  $region9: #{_forward_impl.1} parent=0 // pred_fallthru
    _
  // Predicated region
  $region10: #{_forward_impl.1} parent=0 // pred_check
    _
  $region11: #{_forward_impl.1} parent=0 // pred_check_branch
    %538 = sbr.rel (0) target = $region13
  $region12: #{_forward_impl.1} parent=0 // pred_region
    _
  $region13: #{_forward_impl.1} parent=0 // pred_fallthru
    _

</llo_original>
